<compile_context>
chip_gen: v6e
topology: v6e:2x2x1
jax: 0.10.0
libtpu: 0.0.40
codegen_flags: <defaults>
</compile_context>

<pallas_src>
import functools

import jax
import jax.numpy as jnp
from jax.experimental import pallas as pl
from jax.experimental.pallas import tpu as pltpu


def _round_up(n: int, m: int) -> int:
    return ((n + m - 1) // m) * m


def _cdiv(a: int, b: int) -> int:
    return (a + b - 1) // b


def agent_forward_kernel(x_ref, w1_ref, b1_ref, w2_ref, b2_ref, out_ref):
    """One batch tile, feature-major layout (batch on the lane axis).

    Per-tile shapes:
      x:   (s_size, TB)
      w1:  (h_size, s_size)   b1: (h_size, 1)
      w2:  (a_size, h_size)   b2: (a_size, 1)
      out: (a_size, TB)
    """
    x = x_ref[...]  # (s, TB), lane-dense

    # fc1 + ReLU (f32 accumulate on the MXU; elementwise on lane-dense vregs).
    h = jnp.dot(w1_ref[...], x, preferred_element_type=jnp.float32) + b1_ref[...]
    h = jnp.maximum(h, 0.0)  # (h_size, TB)

    # fc2
    logits = (
        jnp.dot(w2_ref[...], h, preferred_element_type=jnp.float32) + b2_ref[...]
    )  # (a_size, TB)

    # Numerically stable softmax over the action axis (axis 0 here, only
    # a_size=2 sublane rows -> cheap). Exact divide so rows sum to 1.
    m = jnp.max(logits, axis=0, keepdims=True)
    e = jnp.exp(logits - m)
    denom = jnp.sum(e, axis=0, keepdims=True)
    out_ref[...] = (e / denom).astype(out_ref.dtype)


@functools.partial(jax.jit, static_argnames=("block_b",))
def agent_forward(x, w1, b1, w2, b2, *, block_b=8192):
    """Batched Agent.forward.

    x : (B, s_size)  f32
    w1: (h_size, s_size), b1: (h_size,)   (PyTorch nn.Linear convention)
    w2: (a_size, h_size), b2: (a_size,)
    returns probs: (B, a_size) f32, rows sum to 1.
    """
    B, s_size = x.shape
    h_size = w1.shape[0]
    a_size = w2.shape[0]

    # Batch maps to the 128-wide lane axis; even tiling keeps padding <=127.
    b_lane = _round_up(B, 128)
    n_tiles = max(1, _cdiv(b_lane, block_b))
    tb = _round_up(_cdiv(b_lane, n_tiles), 128)
    b_pad = tb * n_tiles

    # Transpose once in the wrapper -> kernel works on feature-major slabs.
    x_t = x.astype(jnp.float32).T  # (s_size, B)
    if b_pad != B:
        x_t = jnp.pad(x_t, ((0, 0), (0, b_pad - B)))

    w1c = w1.astype(jnp.float32)
    w2c = w2.astype(jnp.float32)
    b1c = b1.astype(jnp.float32).reshape(h_size, 1)
    b2c = b2.astype(jnp.float32).reshape(a_size, 1)

    out_t = pl.pallas_call(
        agent_forward_kernel,
        out_shape=jax.ShapeDtypeStruct((a_size, b_pad), jnp.float32),
        grid=(n_tiles,),
        in_specs=[
            # Activations stream through the grid (auto double-buffered).
            pl.BlockSpec((s_size, tb), lambda i: (0, i)),
            # Weights / biases VMEM-resident across all grid steps.
            pl.BlockSpec((h_size, s_size), lambda i: (0, 0)),
            pl.BlockSpec((h_size, 1), lambda i: (0, 0)),
            pl.BlockSpec((a_size, h_size), lambda i: (0, 0)),
            pl.BlockSpec((a_size, 1), lambda i: (0, 0)),
        ],
        out_specs=pl.BlockSpec((a_size, tb), lambda i: (0, i)),
        compiler_params=pltpu.CompilerParams(
            # Batch tiles are independent -> megacore sharding on v7x.
            dimension_semantics=("parallel",),
        ),
    )(x_t, w1c, b1c, w2c, b2c)

    # Drop padding columns and return to (B, a_size).
    return out_t[:, :B].T


def init_agent_params(key, s_size=4, h_size=16, a_size=2):
    """Deterministic init mirroring nn.Linear's U(-1/sqrt(fan_in), +1/sqrt(fan_in)).

    Weights use PyTorch's (out_features, in_features) convention.
    """
    k1, k2, k3, k4 = jax.random.split(key, 4)
    bound1 = 1.0 / float(jnp.sqrt(jnp.float32(s_size)))
    bound2 = 1.0 / float(jnp.sqrt(jnp.float32(h_size)))
    w1 = jax.random.uniform(k1, (h_size, s_size), jnp.float32, -bound1, bound1)
    b1 = jax.random.uniform(k2, (h_size,), jnp.float32, -bound1, bound1)
    w2 = jax.random.uniform(k3, (a_size, h_size), jnp.float32, -bound2, bound2)
    b2 = jax.random.uniform(k4, (a_size,), jnp.float32, -bound2, bound2)
    return w1, b1, w2, b2


def reference_forward(x, w1, b1, w2, b2):
    h = jnp.maximum(x @ w1.T + b1, 0.0)
    logits = h @ w2.T + b2
    return jax.nn.softmax(logits, axis=1)


# TODO(synk): Agent.act (Categorical sampling / log_prob) and Agent.learn
# (REINFORCE loop + Adam) are host/training logic outside forward(); sampling
# could later be fused in-kernel via pltpu.prng_seed/prng_random_bits.


if __name__ == "__main__":
    s_size, h_size, a_size = 4, 16, 2
    batch = 2

    key = jax.random.PRNGKey(0)
    kx, kp, kb = jax.random.split(key, 3)
    x = jax.random.normal(kx, (batch, s_size), jnp.float32)
    w1, b1, w2, b2 = init_agent_params(kp, s_size, h_size, a_size)

    # Small per-env-step batch (B=2): single grid step, semantics check.
    probs = agent_forward(x, w1, b1, w2, b2)
    jax.block_until_ready(probs)
    ref = reference_forward(x, w1, b1, w2, b2)
    assert probs.shape == (batch, a_size)
    assert jnp.allclose(probs, ref, atol=2e-3, rtol=2e-3)
    assert jnp.allclose(jnp.sum(probs, axis=1), jnp.ones((batch,)), atol=1e-5)

    # Large rollout batch in one call: single tile, lane-dense feature-major
    # layout, weights VMEM-resident.
    big_b = 1024
    xb = jax.random.normal(kb, (big_b, s_size), jnp.float32)
    probs_big = agent_forward(xb, w1, b1, w2, b2)
    jax.block_until_ready(probs_big)
    ref_big = reference_forward(xb, w1, b1, w2, b2)
    assert probs_big.shape == (big_b, a_size)
    assert jnp.allclose(probs_big, ref_big, atol=2e-3, rtol=2e-3)
    assert jnp.allclose(jnp.sum(probs_big, axis=1), jnp.ones((big_b,)), atol=1e-5)

    # Multi-tile path (2 tiles of 512 lanes): exercises the streamed batch
    # grid + constant-index-map weights (what v7x megacore sharding would use).
    probs_tiled = agent_forward(xb, w1, b1, w2, b2, block_b=512)
    jax.block_until_ready(probs_tiled)
    assert jnp.allclose(probs_tiled, ref_big, atol=2e-3, rtol=2e-3)
    assert jnp.allclose(jnp.sum(probs_tiled, axis=1), jnp.ones((big_b,)), atol=1e-5)

    print("KERNEL_OK")
</pallas_src>

<mosaic_0001>
module attributes {stable_mosaic.version = 11 : i64} {
  func.func @agent_forward_kernel(%arg0: i32, %arg1: memref<4x128xf32, #tpu.memory_space<vmem>>, %arg2: memref<16x4xf32, #tpu.memory_space<vmem>>, %arg3: memref<16x1xf32, #tpu.memory_space<vmem>>, %arg4: memref<2x16xf32, #tpu.memory_space<vmem>>, %arg5: memref<2x1xf32, #tpu.memory_space<vmem>>, %arg6: memref<2x128xf32, #tpu.memory_space<vmem>>) attributes {dimension_semantics = [#tpu.dimension_semantics<parallel>], iteration_bounds = array<i64: 1>, scalar_prefetch = 0 : i64, scratch_operands = 0 : i64, tpu.core_type = #tpu.core_type<tc>, window_params = [{transform_indices = @transform_0, window_bounds = array<i64: 4, 128>}, {pipeline_mode = #tpu.pipeline_mode<synchronous>, transform_indices = @transform_1, window_bounds = array<i64: 16, 4>}, {pipeline_mode = #tpu.pipeline_mode<synchronous>, transform_indices = @transform_2, window_bounds = array<i64: 16, 1>}, {pipeline_mode = #tpu.pipeline_mode<synchronous>, transform_indices = @transform_3, window_bounds = array<i64: 2, 16>}, {pipeline_mode = #tpu.pipeline_mode<synchronous>, transform_indices = @transform_4, window_bounds = array<i64: 2, 1>}, {transform_indices = @transform_5, window_bounds = array<i64: 2, 128>}]} {
    %c0 = arith.constant 0 : index
    %c0_0 = arith.constant 0 : index
    %0 = vector.load %arg1[%c0, %c0_0] : memref<4x128xf32, #tpu.memory_space<vmem>>, vector<4x128xf32>
    %c0_1 = arith.constant 0 : index
    %c0_2 = arith.constant 0 : index
    %1 = vector.load %arg2[%c0_1, %c0_2] : memref<16x4xf32, #tpu.memory_space<vmem>>, vector<16x4xf32>
    %cst = arith.constant dense<0.000000e+00> : vector<16x128xf32>
    %2 = tpu.matmul %1, %0, %cst {dimension_numbers = #tpu.dot_dimension_numbers<[1], [0], [0], [1], [0, 0, 1, 1], [], []>} : vector<16x4xf32>, vector<4x128xf32>, vector<16x128xf32> -> vector<16x128xf32>
    %c0_3 = arith.constant 0 : index
    %c0_4 = arith.constant 0 : index
    %3 = vector.load %arg3[%c0_3, %c0_4] : memref<16x1xf32, #tpu.memory_space<vmem>>, vector<16x1xf32>
    %4 = vector.broadcast %3 : vector<16x1xf32> to vector<16x128xf32>
    %5 = arith.addf %2, %4 : vector<16x128xf32>
    %cst_5 = arith.constant 0.000000e+00 : f32
    %6 = vector.broadcast %cst_5 : f32 to vector<16x128xf32>
    %7 = arith.maximumf %5, %6 : vector<16x128xf32>
    %c0_6 = arith.constant 0 : index
    %c0_7 = arith.constant 0 : index
    %8 = vector.load %arg4[%c0_6, %c0_7] : memref<2x16xf32, #tpu.memory_space<vmem>>, vector<2x16xf32>
    %cst_8 = arith.constant dense<0.000000e+00> : vector<2x128xf32>
    %9 = tpu.matmul %8, %7, %cst_8 {dimension_numbers = #tpu.dot_dimension_numbers<[1], [0], [0], [1], [0, 0, 1, 1], [], []>} : vector<2x16xf32>, vector<16x128xf32>, vector<2x128xf32> -> vector<2x128xf32>
    %c0_9 = arith.constant 0 : index
    %c0_10 = arith.constant 0 : index
    %10 = vector.load %arg5[%c0_9, %c0_10] : memref<2x1xf32, #tpu.memory_space<vmem>>, vector<2x1xf32>
    %11 = vector.broadcast %10 : vector<2x1xf32> to vector<2x128xf32>
    %12 = arith.addf %9, %11 : vector<2x128xf32>
    %cst_11 = arith.constant dense<0xFF800000> : vector<128xf32>
    %13 = vector.multi_reduction <maximumf>, %12, %cst_11 [0] : vector<2x128xf32> to vector<128xf32>
    %14 = vector.shape_cast %13 : vector<128xf32> to vector<1x128xf32>
    %15 = vector.broadcast %14 : vector<1x128xf32> to vector<2x128xf32>
    %16 = arith.subf %12, %15 : vector<2x128xf32>
    %17 = math.exp %16 : vector<2x128xf32>
    %cst_12 = arith.constant dense<0.000000e+00> : vector<128xf32>
    %18 = vector.multi_reduction <add>, %17, %cst_12 [0] : vector<2x128xf32> to vector<128xf32>
    %19 = vector.shape_cast %18 : vector<128xf32> to vector<1x128xf32>
    %20 = vector.broadcast %19 : vector<1x128xf32> to vector<2x128xf32>
    %21 = arith.divf %17, %20 : vector<2x128xf32>
    %c0_13 = arith.constant 0 : index
    %c0_14 = arith.constant 0 : index
    %22 = vector.load %arg6[%c0_13, %c0_14] : memref<2x128xf32, #tpu.memory_space<vmem>>, vector<2x128xf32>
    tpu.vector_store %arg6[%c0_13, %c0_14], %21 {strides = array<i32>} : memref<2x128xf32, #tpu.memory_space<vmem>>, vector<2x128xf32>,
    return
  }
  func.func @transform_0(%arg0: i32) -> (i32, i32) {
    %c0_i32 = arith.constant 0 : i32
    %c0_i32_0 = arith.constant 0 : i32
    return %c0_i32, %arg0 : i32, i32
  }
  func.func @transform_1(%arg0: i32) -> (i32, i32) {
    %c0_i32 = arith.constant 0 : i32
    %c0_i32_0 = arith.constant 0 : i32
    %c0_i32_1 = arith.constant 0 : i32
    return %c0_i32, %c0_i32_0 : i32, i32
  }
  func.func @transform_2(%arg0: i32) -> (i32, i32) {
    %c0_i32 = arith.constant 0 : i32
    %c0_i32_0 = arith.constant 0 : i32
    %c0_i32_1 = arith.constant 0 : i32
    return %c0_i32, %c0_i32_0 : i32, i32
  }
  func.func @transform_3(%arg0: i32) -> (i32, i32) {
    %c0_i32 = arith.constant 0 : i32
    %c0_i32_0 = arith.constant 0 : i32
    %c0_i32_1 = arith.constant 0 : i32
    return %c0_i32, %c0_i32_0 : i32, i32
  }
  func.func @transform_4(%arg0: i32) -> (i32, i32) {
    %c0_i32 = arith.constant 0 : i32
    %c0_i32_0 = arith.constant 0 : i32
    %c0_i32_1 = arith.constant 0 : i32
    return %c0_i32, %c0_i32_0 : i32, i32
  }
  func.func @transform_5(%arg0: i32) -> (i32, i32) {
    %c0_i32 = arith.constant 0 : i32
    %c0_i32_0 = arith.constant 0 : i32
    return %c0_i32, %arg0 : i32, i32
  }
}

</mosaic_0001>

<llo_original>
// kernel: agent_forward.1
$region0: #{agent_forward.1}
  #allocation0 [shape = 'u32[]', space=smem, size = 0x4, offset = 0x4, fixed_abs, tag = 'smem constant byte address 0x4 - core index']
  #allocation1 [shape = 'u32[144,128]{1,0:T(1,128)}', space=vmem, size = 0x12000, scoped, tag = 'internal scratch']
  %s0 = inlined_call_operand.vmem [shape: f32[4,128], index: 0, kind: input, shape index: {}]
  %s1 = inlined_call_operand.vmem [shape: f32[16,4], index: 1, kind: input, shape index: {}]
  %s2 = inlined_call_operand.vmem [shape: f32[16,1], index: 2, kind: input, shape index: {}]
  %s3 = inlined_call_operand.vmem [shape: f32[2,16], index: 3, kind: input, shape index: {}]
  %s4 = inlined_call_operand.vmem [shape: f32[2,1], index: 4, kind: input, shape index: {}]
  %s5 = inlined_call_operand.vmem [shape: f32[2,128], index: 5, kind: output, shape index: {}]
  %s6 = sld [smem:[#allocation0]]
  $region30: #{agent_forward.1} parent=0
    _
  %s8 = ssub.s32 1, %s6
  %s9 = scalar_select 0, %s8, %s6
  // Predicated region
  $region2: #{agent_forward.1} parent=0 // pred_check
    _
  $region3: #{agent_forward.1} parent=0 // pred_check_branch
    %11 = sbr.rel (0) target = $region5
  $region4: #{agent_forward.1} parent=0 // pred_region
    _
  $region5: #{agent_forward.1} parent=0 // pred_fallthru
    _
  // Predicated region
  $region6: #{agent_forward.1} parent=0 // pred_check
    _
  $region7: #{agent_forward.1} parent=0 // pred_check_branch
    %13 = sbr.rel (0) target = $region9
  $region8: #{agent_forward.1} parent=0 // pred_region
    _
  $region9: #{agent_forward.1} parent=0 // pred_fallthru
    _
  // Predicated region
  $region10: #{agent_forward.1} parent=0 // pred_check
    _
  $region11: #{agent_forward.1} parent=0 // pred_check_branch
    %15 = sbr.rel (0) target = $region13
  $region12: #{agent_forward.1} parent=0 // pred_region
    _
  $region13: #{agent_forward.1} parent=0 // pred_fallthru
    _
  // Predicated region
  $region14: #{agent_forward.1} parent=0 // pred_check
    _
  $region15: #{agent_forward.1} parent=0 // pred_check_branch
    %17 = sbr.rel (0) target = $region17
  $region16: #{agent_forward.1} parent=0 // pred_region
    _
  $region17: #{agent_forward.1} parent=0 // pred_fallthru
    _
  // Predicated region
  $region18: #{agent_forward.1} parent=0 // pred_check
    _
  $region19: #{agent_forward.1} parent=0 // pred_check_branch
    %19 = sbr.rel (0) target = $region21
  $region20: #{agent_forward.1} parent=0 // pred_region
    _
  $region21: #{agent_forward.1} parent=0 // pred_fallthru
    _
  %v20 = vld [vmem:[%s0] sm:$0xf]
  %v21 = vld [vmem:[%s1] sm:$0xff]
  %v22 = vld [vmem:[%s1 + $0x8] sm:$0xff]
  %v23 = vld [vmem:[%s2] sm:$0xff]
  %v24 = vld [vmem:[%s2 + $0x8] sm:$0xff]
  %26 = vset.pattern.permute.xlu0 0
  %27 = vperm.xlu0 %26, %v23
  %v28 = vpop.permute.xlu0 %27
  %31 = vset.pattern.permute.xlu0 0
  %32 = vperm.xlu0 %31, %v24
  %v33 = vpop.permute.xlu0 %32
  %vm35 = vcmask 31744
  %v37 = vsel %vm35, %v21, 0
  %v40 = vsel %vm35, %v22, 0
  %vm42 = vcmask 1043456
  %v44 = vsel %vm42, %v20, 0
  %46 = vmatprep.subr.mxu0 0.0
  %47 = vmatpush1.msra.mxu0 0.0
  %48 = vmatprep.subr.mxu0 0.0
  %49 = vmatpush1.msra.mxu0 0.0
  %50 = vmatprep.subr.mxu0 0.0
  %51 = vmatpush1.msra.mxu0 0.0
  %52 = vmatprep.subr.mxu0 0.0
  %53 = vmatpush1.msra.mxu0 0.0
  %54 = vmatprep.subr.mxu0 0.0
  %55 = vmatpush1.msra.mxu0 0.0
  %56 = vmatprep.subr.mxu0 0.0
  %57 = vmatpush1.msra.mxu0 0.0
  %58 = vmatprep.subr.mxu0 0.0
  %59 = vmatpush1.msra.mxu0 0.0
  %60 = vmatprep.subr.mxu0 0.0
  %61 = vmatpush1.msra.mxu0 0.0
  %62 = vmatprep.subr.mxu0 0.0
  %63 = vmatpush1.msra.mxu0 0.0
  %64 = vmatprep.subr.mxu0 0.0
  %65 = vmatpush1.msra.mxu0 0.0
  %66 = vmatprep.subr.mxu0 0.0
  %67 = vmatpush1.msra.mxu0 0.0
  %68 = vmatprep.subr.mxu0 0.0
  %69 = vmatpush1.msra.mxu0 0.0
  %70 = vmatprep.subr.mxu0 0.0
  %71 = vmatpush1.msra.mxu0 0.0
  %72 = vmatprep.subr.mxu0 0.0
  %73 = vmatpush1.msra.mxu0 0.0
  %74 = vmatprep.subr.mxu0 0.0
  %75 = vmatpush1.msra.mxu0 0.0
  %76 = vmatprep.subr.mxu0 0.0
  %77 = vmatpush1.msra.mxu0 %v44
  %78 = vmatprep.subr.mxu0 0.0
  %79 = vmatpush2.msra.mxu0 0.0
  %80 = vmatprep.subr.mxu0 0.0
  %81 = vmatpush2.msra.mxu0 0.0
  %82 = vmatprep.subr.mxu0 0.0
  %83 = vmatpush2.msra.mxu0 0.0
  %84 = vmatprep.subr.mxu0 0.0
  %85 = vmatpush2.msra.mxu0 0.0
  %86 = vmatprep.subr.mxu0 0.0
  %87 = vmatpush2.msra.mxu0 0.0
  %88 = vmatprep.subr.mxu0 0.0
  %89 = vmatpush2.msra.mxu0 0.0
  %90 = vmatprep.subr.mxu0 0.0
  %91 = vmatpush2.msra.mxu0 0.0
  %92 = vmatprep.subr.mxu0 0.0
  %93 = vmatpush2.msra.mxu0 0.0
  %94 = vmatprep.subr.mxu0 0.0
  %95 = vmatpush2.msra.mxu0 0.0
  %96 = vmatprep.subr.mxu0 0.0
  %97 = vmatpush2.msra.mxu0 0.0
  %98 = vmatprep.subr.mxu0 0.0
  %99 = vmatpush2.msra.mxu0 0.0
  %100 = vmatprep.subr.mxu0 0.0
  %101 = vmatpush2.msra.mxu0 0.0
  %102 = vmatprep.subr.mxu0 0.0
  %103 = vmatpush2.msra.mxu0 0.0
  %104 = vmatprep.subr.mxu0 0.0
  %105 = vmatpush2.msra.mxu0 0.0
  %106 = vmatprep.subr.mxu0 0.0
  %107 = vmatpush2.msra.mxu0 0.0
  %108 = vmatprep.subr.mxu0 0.0
  %109 = vmatpush2.msra.mxu0 0.0
  %110 = vmatprep.mubr.f32.mxu0 0.0
  %111 = vmatmul.mubr.f32.gmra.mxu0 %v37
  %v112 = vpop.f32.mrf.mxu0
  %v113 = vadd.f32 %v28, %v112
  %v114 = vpop.f32.mrf.mxu0
  %115 = vmatprep.mubr.f32.mxu0 0.0
  %116 = vmatmul.mubr.f32.gmra.mxu0 %v40
  %v117 = vpop.f32.mrf.mxu0
  %v118 = vadd.f32 %v33, %v117
  %v119 = vpop.f32.mrf.mxu0
  %120 = vdwg.mxu0
  %v121 = vmax.f32 %v113, 0.0
  %v122 = vmax.f32 %v118, 0.0
  %v123 = vld [vmem:[%s3] sm:$0x3]
  %v124 = vld [vmem:[%s4] sm:$0x3]
  %126 = vset.pattern.permute.xlu0 0
  %127 = vperm.xlu0 %126, %v124
  %v128 = vpop.permute.xlu0 %127
  %vm130 = vcmask 130048
  %v132 = vsel %vm130, %v123, 0
  %134 = vmatprep.subr.mxu0 0.0
  %135 = vmatpush1.msra.mxu0 0.0
  %136 = vmatprep.subr.mxu0 0.0
  %137 = vmatpush1.msra.mxu0 0.0
  %138 = vmatprep.subr.mxu0 0.0
  %139 = vmatpush1.msra.mxu0 0.0
  %140 = vmatprep.subr.mxu0 0.0
  %141 = vmatpush1.msra.mxu0 0.0
  %142 = vmatprep.subr.mxu0 0.0
  %143 = vmatpush1.msra.mxu0 0.0
  %144 = vmatprep.subr.mxu0 0.0
  %145 = vmatpush1.msra.mxu0 0.0
  %146 = vmatprep.subr.mxu0 0.0
  %147 = vmatpush1.msra.mxu0 0.0
  %148 = vmatprep.subr.mxu0 0.0
  %149 = vmatpush1.msra.mxu0 0.0
  %150 = vmatprep.subr.mxu0 0.0
  %151 = vmatpush1.msra.mxu0 0.0
  %152 = vmatprep.subr.mxu0 0.0
  %153 = vmatpush1.msra.mxu0 0.0
  %154 = vmatprep.subr.mxu0 0.0
  %155 = vmatpush1.msra.mxu0 0.0
  %156 = vmatprep.subr.mxu0 0.0
  %157 = vmatpush1.msra.mxu0 0.0
  %158 = vmatprep.subr.mxu0 0.0
  %159 = vmatpush1.msra.mxu0 0.0
  %160 = vmatprep.subr.mxu0 0.0
  %161 = vmatpush1.msra.mxu0 0.0
  %162 = vmatprep.subr.mxu0 0.0
  %163 = vmatpush1.msra.mxu0 %v122
  %164 = vmatprep.subr.mxu0 0.0
  %165 = vmatpush1.msra.mxu0 %v121
  %166 = vmatprep.subr.mxu0 0.0
  %167 = vmatpush2.msra.mxu0 0.0
  %168 = vmatprep.subr.mxu0 0.0
  %169 = vmatpush2.msra.mxu0 0.0
  %170 = vmatprep.subr.mxu0 0.0
  %171 = vmatpush2.msra.mxu0 0.0
  %172 = vmatprep.subr.mxu0 0.0
  %173 = vmatpush2.msra.mxu0 0.0
  %174 = vmatprep.subr.mxu0 0.0
  %175 = vmatpush2.msra.mxu0 0.0
  %176 = vmatprep.subr.mxu0 0.0
  %177 = vmatpush2.msra.mxu0 0.0
  %178 = vmatprep.subr.mxu0 0.0
  %179 = vmatpush2.msra.mxu0 0.0
  %180 = vmatprep.subr.mxu0 0.0
  %181 = vmatpush2.msra.mxu0 0.0
  %182 = vmatprep.subr.mxu0 0.0
  %183 = vmatpush2.msra.mxu0 0.0
  %184 = vmatprep.subr.mxu0 0.0
  %185 = vmatpush2.msra.mxu0 0.0
  %186 = vmatprep.subr.mxu0 0.0
  %187 = vmatpush2.msra.mxu0 0.0
  %188 = vmatprep.subr.mxu0 0.0
  %189 = vmatpush2.msra.mxu0 0.0
  %190 = vmatprep.subr.mxu0 0.0
  %191 = vmatpush2.msra.mxu0 0.0
  %192 = vmatprep.subr.mxu0 0.0
  %193 = vmatpush2.msra.mxu0 0.0
  %194 = vmatprep.subr.mxu0 0.0
  %195 = vmatpush2.msra.mxu0 0.0
  %196 = vmatprep.subr.mxu0 0.0
  %197 = vmatpush2.msra.mxu0 0.0
  %198 = vmatprep.mubr.f32.mxu0 0.0
  %199 = vmatmul.mubr.f32.gmra.mxu0 %v132
  %v200 = vpop.f32.mrf.mxu0
  %v201 = vadd.f32 %v128, %v200
  %v202 = vpop.f32.mrf.mxu0
  %203 = vdwg.mxu0
  %vm204 = vcmask 1041408
  %v205 = vsel %vm204, %v201, -inf
  %v206 = vrot.slane %v205, 4
  %v207 = vmax.f32 %v205, %v206
  %v208 = vrot.slane %v207, 2
  %v209 = vmax.f32 %v207, %v208
  %v210 = vrot.slane %v209, 1
  %v211 = vmax.f32 %v209, %v210
  %v212 = vsub.f32 %v201, %v211
  %v213 = vmul.f32 %v212, 1.442695
  %v214 = vpow.pop %v213
  %v215 = vsel %vm204, %v214, 0.0
  %v216 = vrot.slane %v215, 4
  %v217 = vadd.f32 %v215, %v216
  %v218 = vrot.slane %v217, 2
  %v219 = vadd.f32 %v217, %v218
  %v220 = vrot.slane %v219, 1
  %v221 = vadd.f32 %v219, %v220
  %v222 = vrcp.pop %v221
  %v223 = vmul.f32 %v214, %v222
  %224 = vst [vmem:[%s5] sm:$0x3] %v223
  // Predicated region
  $region22: #{agent_forward.1} parent=0 // pred_check
    _
  $region23: #{agent_forward.1} parent=0 // pred_check_branch
    %226 = sbr.rel (0) target = $region25
  $region24: #{agent_forward.1} parent=0 // pred_region
    _
  $region25: #{agent_forward.1} parent=0 // pred_fallthru
    _
  // Predicated region
  $region26: #{agent_forward.1} parent=0 // pred_check
    _
  $region27: #{agent_forward.1} parent=0 // pred_check_branch
    %228 = sbr.rel (0) target = $region29
  $region28: #{agent_forward.1} parent=0 // pred_region
    _
  $region29: #{agent_forward.1} parent=0 // pred_fallthru
    _

</llo_original>
